<compile_context>
chip_gen: v5e
topology: v5e:2x2
jax: 0.10.0
libtpu: 0.0.40
codegen_flags: <defaults>
</compile_context>

<pallas_src>
import functools

import jax
import jax.numpy as jnp
from jax import lax
from jax.experimental import pallas as pl
from jax.experimental.pallas import tpu as pltpu


N_TAPS = 9  # 3x3 convolution


def relation_kernel(y_ref, w_ref, aux_ref, z_ref, big_ref, *, width, rt):
    """Fused 3x3 conv (g + projected phi) + spatial softmax + weighted sum.

    y_ref   (256, HW)    f32   flattened activation (un-padded, un-shifted)
    w_ref   (Mpad, 256)  bf16  9 taps stacked along M; per tap `rt` rows:
                                 rows :C  = gamma * w_g[:, :, kh, kw]
                                 row   C  = wcp @ w_phi[:, :, kh, kw]
                                 rest     = 0 (pad to a sublane multiple)
    aux_ref (10, HW)     f32   rows 0..8 = per-tap 0/1 shift/border masks,
                               row 9[:C] = gamma * b_g
    z_ref   (N, C)       f32   output
    big_ref (Mpad, HW)   f32   VMEM scratch for the stacked matmul result
    """
    n, c = z_ref.shape
    hw = y_ref.shape[1]

    # One MXU pass: every tap against the same lane-aligned activation.
    # bf16 operands (cast here: no wrapper HBM round trip), f32 accumulation,
    # result routed through VMEM scratch instead of ~56 live vregs.
    y_bf = y_ref[...].astype(jnp.bfloat16)
    big_ref[...] = jnp.dot(w_ref[...], y_bf, preferred_element_type=jnp.float32)

    # Shift-after-matmul: per tap, circular-lane-shift the small (rt, HW) f32
    # result and zero the wrapped / out-of-image lanes with its precomputed
    # mask, then accumulate.  (XLU/VPU work only; the MXU is already done.)
    acc = jnp.zeros((rt, hw), jnp.float32)
    for kh in range(3):
        for kw in range(3):
            t = kh * 3 + kw
            d = (kh - 1) * width + (kw - 1)            # flat spatial offset
            contrib = big_ref[t * rt:(t + 1) * rt, :]  # sublane-aligned slice
            if d != 0:
                s = d % hw
                # shifted[:, p] = contrib[:, (p + d) % hw]  (explicit circular
                # shift; lowers to the same lane rotate pltpu.roll would emit)
                contrib = jnp.concatenate(
                    [contrib[:, s:], contrib[:, :s]], axis=1)
                contrib = contrib * aux_ref[t:t + 1, :]
            acc = acc + contrib

    g_rows = acc[:c, :]          # (C, HW): gamma * conv_g(y)  (bias added below)
    phi_row = acc[c:c + 1, :]    # (1, HW): wcp . conv_phi(y)

    # Spatial softmax.  The theta(x) term and every f bias are constant over
    # the spatial axis for each instance, so they cancel exactly inside this
    # softmax (the reference module has the same degeneracy: its output is
    # independent of x and identical across the N rows) -> ONE softmax row.
    f = phi_row - jnp.max(phi_row, axis=1, keepdims=True)
    p = jnp.exp(f)
    p = p * pl.reciprocal(jnp.sum(p, axis=1, keepdims=True), approx=True)

    # z = p @ g_rows.T, broadcast to all N output rows.  The trans-B
    # contraction keeps g channel-major (no explicit relayout in the kernel);
    # at (N, HW) x (HW, C) this epilogue matmul is noise.  gamma*b_g is added
    # afterwards (sum(p) == 1 folds the g-conv bias out of the matmul).
    p_all = jnp.broadcast_to(p, (n, hw))
    z = lax.dot_general(p_all, g_rows, (((1,), (1,)), ((), ())),
                        preferred_element_type=jnp.float32)
    z_ref[...] = z + aux_ref[N_TAPS:N_TAPS + 1, :c]


def fold_relation_params(params, h, w):
    """Fold concat_project / gamma into the conv weights and pack the tiny
    side inputs.  Params are static at inference: do this ONCE, outside the
    per-call path (re-doing the transposes/einsum/pad/cast per call is a
    measurable overhead for a microsecond-scale kernel)."""
    w_g, b_g = params["w_g"], params["b_g"]
    w_phi = params["w_phi"]
    w_cat, gamma = params["w_cat"], params["gamma"]

    c, ych = w_g.shape[0], w_g.shape[1]
    hw = h * w
    assert c + 1 <= hw, "bias-row packing needs HW >= C+1"
    g0 = gamma[0]

    wcp = w_cat.reshape(2 * c)[c:]   # phi half of concat_project
    # (the theta half wct and the phi/theta biases are spatially constant
    #  logit shifts and cancel inside the softmax -- see kernel docstring.)

    # Stacked LHS: per tap [gamma * w_g tap (C rows); wcp @ w_phi tap (1 row)],
    # padded to rt rows (multiple of 8 -> sublane-aligned f32 result slices),
    # all 9 taps along M, M padded to a multiple of 16 (clean bf16 sublane
    # packing, near-full use of the 256-row MXU).
    rt = ((c + 1 + 7) // 8) * 8
    wg_taps = jnp.transpose(w_g, (2, 3, 0, 1)).reshape(N_TAPS, c, ych)
    wphi_taps = jnp.transpose(w_phi, (2, 3, 0, 1)).reshape(N_TAPS, c, ych)
    wphi_proj = jnp.einsum('c,tcd->td', wcp, wphi_taps)[:, None, :]   # (9,1,256)
    per_tap = jnp.concatenate([g0 * wg_taps, wphi_proj], axis=1)      # (9,C+1,256)
    per_tap = jnp.pad(per_tap, ((0, 0), (0, rt - (c + 1)), (0, 0)))   # (9,rt,256)
    m = N_TAPS * rt
    m_pad = ((m + 15) // 16) * 16
    w_big = jnp.pad(per_tap.reshape(m, ych), ((0, m_pad - m), (0, 0)))
    w_big = w_big.astype(jnp.bfloat16)

    # Per-tap combined masks (valid shift range AND no left/right row-wrap of
    # the flattened activation), plus gamma*b_g packed as row 9 -> the kernel
    # sees ONE small aux DMA instead of several tiny ones.
    pos = jnp.arange(hw, dtype=jnp.int32)
    col = pos % w
    rows = []
    for kh in range(3):
        for kw in range(3):
            d = (kh - 1) * w + (kw - 1)
            msk = (pos + d >= 0) & (pos + d < hw)
            if kw == 0:
                msk = msk & (col != 0)
            elif kw == 2:
                msk = msk & (col != w - 1)
            rows.append(msk.astype(jnp.float32))
    bias_row = jnp.zeros((hw,), jnp.float32).at[:c].set(g0 * b_g)
    aux = jnp.stack(rows + [bias_row], axis=0)                        # (10, HW)

    return {"w_big": w_big, "aux": aux,
            "c": c, "rt": rt, "width": w, "hw": hw}


def relation_on_spatial(x, y, folded):
    """z = gamma * softmax_spatial(concat_project(theta(x), phi(y))) @ g(y).

    `x` only fixes the number of output rows: the theta term is constant over
    the spatial softmax axis, so (exactly as in the PyTorch module) the output
    is independent of x and identical across its N rows.
    """
    n = x.shape[0]
    c, rt, width, hw = folded["c"], folded["rt"], folded["width"], folded["hw"]
    assert y.shape[0] == 1, "module assumes a single feature map (batch 1)"
    ych = y.shape[1]
    assert y.shape[2] * y.shape[3] == hw

    # No pad / concat / dtype-cast pass over the dominant operand: a plain
    # contiguous reshape (metadata only); the bf16 cast happens in-kernel.
    y_flat = y.reshape(ych, hw)

    w_big, aux = folded["w_big"], folded["aux"]
    m_pad = w_big.shape[0]

    kernel = functools.partial(relation_kernel, width=width, rt=rt)
    flops = 2 * m_pad * ych * hw + 2 * n * hw * c
    bytes_accessed = (4 * ych * hw + 2 * m_pad * ych +
                      4 * aux.shape[0] * hw + 4 * n * c)

    vmem = pl.BlockSpec(memory_space=pltpu.MemorySpace.VMEM)
    return pl.pallas_call(
        kernel,
        out_shape=jax.ShapeDtypeStruct((n, c), jnp.float32),
        in_specs=[vmem, vmem, vmem],
        out_specs=vmem,
        scratch_shapes=[pltpu.VMEM((m_pad, hw), jnp.float32)],
        cost_estimate=pl.CostEstimate(flops=flops, transcendentals=hw,
                                      bytes_accessed=bytes_accessed),
    )(y_flat, w_big, aux)


def reference_forward(x, y, params):
    """Pure-JAX f32 replica of the PyTorch forward (for validation)."""
    dn = ('NCHW', 'OIHW', 'NCHW')
    w_g, b_g = params["w_g"], params["b_g"]
    w_phi, b_phi = params["w_phi"], params["b_phi"]
    w_th, b_th = params["w_theta"], params["b_theta"]
    w_cat, gamma = params["w_cat"], params["gamma"]

    g_y = lax.conv_general_dilated(y, w_g, (1, 1), ((1, 1), (1, 1)),
                                   dimension_numbers=dn) + b_g[None, :, None, None]
    phi_y = lax.conv_general_dilated(y, w_phi, (1, 1), ((1, 1), (1, 1)),
                                     dimension_numbers=dn) + b_phi[None, :, None, None]
    theta_x = x @ w_th.T + b_th
    n, c = theta_x.shape
    res = y.shape[2]
    phi_rep = jnp.tile(phi_y, (n, 1, 1, 1))
    theta_map = jnp.broadcast_to(theta_x[:, :, None, None], (n, c, res, res))
    concat = jnp.concatenate([theta_map, phi_rep], axis=1)
    f = lax.conv_general_dilated(concat, w_cat, (1, 1), ((0, 0), (0, 0)),
                                 dimension_numbers=dn)
    f = jax.nn.softmax(f.reshape(n, -1), axis=1)
    g_mat = jnp.transpose(g_y[0], (1, 2, 0)).reshape(res * res, c)
    return gamma[0] * (f @ g_mat)


if __name__ == "__main__":
    in_channels = 64
    unit_nums = 4
    inter = max(in_channels // unit_nums, 1)       # 16
    n_inst, res = 8, 16                            # x batch, spatial resolution

    key = jax.random.PRNGKey(0)
    k = jax.random.split(key, 6)
    params = {
        "w_g": 0.01 * jax.random.normal(k[0], (inter, 256, 3, 3), jnp.float32),
        "b_g": jnp.zeros((inter,), jnp.float32),
        "w_phi": 0.01 * jax.random.normal(k[1], (inter, 256, 3, 3), jnp.float32),
        "b_phi": jnp.zeros((inter,), jnp.float32),
        "w_theta": 0.01 * jax.random.normal(k[2], (inter, in_channels), jnp.float32),
        "b_theta": jnp.zeros((inter,), jnp.float32),
        "w_cat": 0.01 * jax.random.normal(k[3], (1, 2 * inter, 1, 1), jnp.float32),
        # nn.init sets gamma = 0; use a nonzero deterministic value so the
        # kernel output is observable (z = gamma * f @ g_y would be all-zero).
        "gamma": jnp.array([0.5], jnp.float32),
    }
    x = jax.random.normal(k[4], (n_inst, in_channels), jnp.float32)
    y = jax.random.normal(k[5], (1, 256, res, res), jnp.float32)   # NCHW, batch 1

    # Weight folding happens once, outside the per-call path (static params).
    folded = fold_relation_params(params, res, res)

    z = relation_on_spatial(x, y, folded)
    z = jax.block_until_ready(z)

    z_ref = reference_forward(x, y, params)
    assert z.shape == (n_inst, inter)
    # bf16 MXU operands (f32 accumulation) vs. a pure-f32 reference:
    # observed error is O(1e-4); tolerance is set with ample bf16 headroom.
    max_err = float(jnp.max(jnp.abs(z - z_ref)))
    assert jnp.allclose(z, z_ref, rtol=2e-2, atol=2e-3), max_err
    print("KERNEL_OK")
</pallas_src>

<mosaic_0001>
module attributes {stable_mosaic.version = 11 : i64} {
  func.func @relation_kernel(%arg0: memref<256x256xf32, #tpu.memory_space<vmem>>, %arg1: memref<224x256xbf16, #tpu.memory_space<vmem>>, %arg2: memref<10x256xf32, #tpu.memory_space<vmem>>, %arg3: memref<8x16xf32, #tpu.memory_space<vmem>>, %arg4: memref<224x256xf32, #tpu.memory_space<vmem>>) attributes {dimension_semantics = [], scalar_prefetch = 0 : i64, scratch_operands = 1 : i64, tpu.core_type = #tpu.core_type<tc>} {
    %c0 = arith.constant 0 : index
    %c0_0 = arith.constant 0 : index
    %0 = vector.load %arg0[%c0, %c0_0] : memref<256x256xf32, #tpu.memory_space<vmem>>, vector<256x256xf32>
    %1 = arith.truncf %0 : vector<256x256xf32> to vector<256x256xbf16>
    %c0_1 = arith.constant 0 : index
    %c0_2 = arith.constant 0 : index
    %2 = vector.load %arg1[%c0_1, %c0_2] : memref<224x256xbf16, #tpu.memory_space<vmem>>, vector<224x256xbf16>
    %cst = arith.constant dense<0.000000e+00> : vector<224x256xf32>
    %3 = tpu.matmul %2, %1, %cst {dimension_numbers = #tpu.dot_dimension_numbers<[1], [0], [0], [1], [0, 0, 1, 1], [], []>} : vector<224x256xbf16>, vector<256x256xbf16>, vector<224x256xf32> -> vector<224x256xf32>
    %c0_3 = arith.constant 0 : index
    %c0_4 = arith.constant 0 : index
    %4 = vector.load %arg4[%c0_3, %c0_4] : memref<224x256xf32, #tpu.memory_space<vmem>>, vector<224x256xf32>
    tpu.vector_store %arg4[%c0_3, %c0_4], %3 {strides = array<i32>} : memref<224x256xf32, #tpu.memory_space<vmem>>, vector<224x256xf32>,
    %cst_5 = arith.constant 0.000000e+00 : f32
    %5 = vector.broadcast %cst_5 : f32 to vector<24x256xf32>
    %c0_6 = arith.constant 0 : index
    %c0_7 = arith.constant 0 : index
    %6 = vector.load %arg4[%c0_6, %c0_7] : memref<224x256xf32, #tpu.memory_space<vmem>>, vector<24x256xf32>
    %7 = vector.extract_strided_slice %6 {offsets = [0, 239], sizes = [24, 17], strides = [1, 1]} : vector<24x256xf32> to vector<24x17xf32>
    %8 = vector.extract_strided_slice %6 {offsets = [0, 0], sizes = [24, 239], strides = [1, 1]} : vector<24x256xf32> to vector<24x239xf32>
    %9 = tpu.concatenate %7, %8 in 1 : vector<24x17xf32>, vector<24x239xf32> -> vector<24x256xf32>
    %c0_8 = arith.constant 0 : index
    %c0_9 = arith.constant 0 : index
    %10 = vector.load %arg2[%c0_8, %c0_9] : memref<10x256xf32, #tpu.memory_space<vmem>>, vector<1x256xf32>
    %11 = vector.broadcast %10 : vector<1x256xf32> to vector<24x256xf32>
    %12 = arith.mulf %9, %11 : vector<24x256xf32>
    %13 = arith.addf %5, %12 : vector<24x256xf32>
    %c24 = arith.constant 24 : index
    %c0_10 = arith.constant 0 : index
    %14 = vector.load %arg4[%c24, %c0_10] : memref<224x256xf32, #tpu.memory_space<vmem>>, vector<24x256xf32>
    %15 = vector.extract_strided_slice %14 {offsets = [0, 240], sizes = [24, 16], strides = [1, 1]} : vector<24x256xf32> to vector<24x16xf32>
    %16 = vector.extract_strided_slice %14 {offsets = [0, 0], sizes = [24, 240], strides = [1, 1]} : vector<24x256xf32> to vector<24x240xf32>
    %17 = tpu.concatenate %15, %16 in 1 : vector<24x16xf32>, vector<24x240xf32> -> vector<24x256xf32>
    %c1 = arith.constant 1 : index
    %c0_11 = arith.constant 0 : index
    %18 = vector.load %arg2[%c1, %c0_11] : memref<10x256xf32, #tpu.memory_space<vmem>>, vector<1x256xf32>
    %19 = vector.broadcast %18 : vector<1x256xf32> to vector<24x256xf32>
    %20 = arith.mulf %17, %19 : vector<24x256xf32>
    %21 = arith.addf %13, %20 : vector<24x256xf32>
    %c48 = arith.constant 48 : index
    %c0_12 = arith.constant 0 : index
    %22 = vector.load %arg4[%c48, %c0_12] : memref<224x256xf32, #tpu.memory_space<vmem>>, vector<24x256xf32>
    %23 = vector.extract_strided_slice %22 {offsets = [0, 241], sizes = [24, 15], strides = [1, 1]} : vector<24x256xf32> to vector<24x15xf32>
    %24 = vector.extract_strided_slice %22 {offsets = [0, 0], sizes = [24, 241], strides = [1, 1]} : vector<24x256xf32> to vector<24x241xf32>
    %25 = tpu.concatenate %23, %24 in 1 : vector<24x15xf32>, vector<24x241xf32> -> vector<24x256xf32>
    %c2 = arith.constant 2 : index
    %c0_13 = arith.constant 0 : index
    %26 = vector.load %arg2[%c2, %c0_13] : memref<10x256xf32, #tpu.memory_space<vmem>>, vector<1x256xf32>
    %27 = vector.broadcast %26 : vector<1x256xf32> to vector<24x256xf32>
    %28 = arith.mulf %25, %27 : vector<24x256xf32>
    %29 = arith.addf %21, %28 : vector<24x256xf32>
    %c72 = arith.constant 72 : index
    %c0_14 = arith.constant 0 : index
    %30 = vector.load %arg4[%c72, %c0_14] : memref<224x256xf32, #tpu.memory_space<vmem>>, vector<24x256xf32>
    %31 = vector.extract_strided_slice %30 {offsets = [0, 255], sizes = [24, 1], strides = [1, 1]} : vector<24x256xf32> to vector<24x1xf32>
    %32 = vector.extract_strided_slice %30 {offsets = [0, 0], sizes = [24, 255], strides = [1, 1]} : vector<24x256xf32> to vector<24x255xf32>
    %33 = tpu.concatenate %31, %32 in 1 : vector<24x1xf32>, vector<24x255xf32> -> vector<24x256xf32>
    %c3 = arith.constant 3 : index
    %c0_15 = arith.constant 0 : index
    %34 = vector.load %arg2[%c3, %c0_15] : memref<10x256xf32, #tpu.memory_space<vmem>>, vector<1x256xf32>
    %35 = vector.broadcast %34 : vector<1x256xf32> to vector<24x256xf32>
    %36 = arith.mulf %33, %35 : vector<24x256xf32>
    %37 = arith.addf %29, %36 : vector<24x256xf32>
    %c96 = arith.constant 96 : index
    %c0_16 = arith.constant 0 : index
    %38 = vector.load %arg4[%c96, %c0_16] : memref<224x256xf32, #tpu.memory_space<vmem>>, vector<24x256xf32>
    %39 = arith.addf %37, %38 : vector<24x256xf32>
    %c120 = arith.constant 120 : index
    %c0_17 = arith.constant 0 : index
    %40 = vector.load %arg4[%c120, %c0_17] : memref<224x256xf32, #tpu.memory_space<vmem>>, vector<24x256xf32>
    %41 = vector.extract_strided_slice %40 {offsets = [0, 1], sizes = [24, 255], strides = [1, 1]} : vector<24x256xf32> to vector<24x255xf32>
    %42 = vector.extract_strided_slice %40 {offsets = [0, 0], sizes = [24, 1], strides = [1, 1]} : vector<24x256xf32> to vector<24x1xf32>
    %43 = tpu.concatenate %41, %42 in 1 : vector<24x255xf32>, vector<24x1xf32> -> vector<24x256xf32>
    %c5 = arith.constant 5 : index
    %c0_18 = arith.constant 0 : index
    %44 = vector.load %arg2[%c5, %c0_18] : memref<10x256xf32, #tpu.memory_space<vmem>>, vector<1x256xf32>
    %45 = vector.broadcast %44 : vector<1x256xf32> to vector<24x256xf32>
    %46 = arith.mulf %43, %45 : vector<24x256xf32>
    %47 = arith.addf %39, %46 : vector<24x256xf32>
    %c144 = arith.constant 144 : index
    %c0_19 = arith.constant 0 : index
    %48 = vector.load %arg4[%c144, %c0_19] : memref<224x256xf32, #tpu.memory_space<vmem>>, vector<24x256xf32>
    %49 = vector.extract_strided_slice %48 {offsets = [0, 15], sizes = [24, 241], strides = [1, 1]} : vector<24x256xf32> to vector<24x241xf32>
    %50 = vector.extract_strided_slice %48 {offsets = [0, 0], sizes = [24, 15], strides = [1, 1]} : vector<24x256xf32> to vector<24x15xf32>
    %51 = tpu.concatenate %49, %50 in 1 : vector<24x241xf32>, vector<24x15xf32> -> vector<24x256xf32>
    %c6 = arith.constant 6 : index
    %c0_20 = arith.constant 0 : index
    %52 = vector.load %arg2[%c6, %c0_20] : memref<10x256xf32, #tpu.memory_space<vmem>>, vector<1x256xf32>
    %53 = vector.broadcast %52 : vector<1x256xf32> to vector<24x256xf32>
    %54 = arith.mulf %51, %53 : vector<24x256xf32>
    %55 = arith.addf %47, %54 : vector<24x256xf32>
    %c168 = arith.constant 168 : index
    %c0_21 = arith.constant 0 : index
    %56 = vector.load %arg4[%c168, %c0_21] : memref<224x256xf32, #tpu.memory_space<vmem>>, vector<24x256xf32>
    %57 = vector.extract_strided_slice %56 {offsets = [0, 16], sizes = [24, 240], strides = [1, 1]} : vector<24x256xf32> to vector<24x240xf32>
    %58 = vector.extract_strided_slice %56 {offsets = [0, 0], sizes = [24, 16], strides = [1, 1]} : vector<24x256xf32> to vector<24x16xf32>
    %59 = tpu.concatenate %57, %58 in 1 : vector<24x240xf32>, vector<24x16xf32> -> vector<24x256xf32>
    %c7 = arith.constant 7 : index
    %c0_22 = arith.constant 0 : index
    %60 = vector.load %arg2[%c7, %c0_22] : memref<10x256xf32, #tpu.memory_space<vmem>>, vector<1x256xf32>
    %61 = vector.broadcast %60 : vector<1x256xf32> to vector<24x256xf32>
    %62 = arith.mulf %59, %61 : vector<24x256xf32>
    %63 = arith.addf %55, %62 : vector<24x256xf32>
    %c192 = arith.constant 192 : index
    %c0_23 = arith.constant 0 : index
    %64 = vector.load %arg4[%c192, %c0_23] : memref<224x256xf32, #tpu.memory_space<vmem>>, vector<24x256xf32>
    %65 = vector.extract_strided_slice %64 {offsets = [0, 17], sizes = [24, 239], strides = [1, 1]} : vector<24x256xf32> to vector<24x239xf32>
    %66 = vector.extract_strided_slice %64 {offsets = [0, 0], sizes = [24, 17], strides = [1, 1]} : vector<24x256xf32> to vector<24x17xf32>
    %67 = tpu.concatenate %65, %66 in 1 : vector<24x239xf32>, vector<24x17xf32> -> vector<24x256xf32>
    %c8 = arith.constant 8 : index
    %c0_24 = arith.constant 0 : index
    %68 = vector.load %arg2[%c8, %c0_24] : memref<10x256xf32, #tpu.memory_space<vmem>>, vector<1x256xf32>
    %69 = vector.broadcast %68 : vector<1x256xf32> to vector<24x256xf32>
    %70 = arith.mulf %67, %69 : vector<24x256xf32>
    %71 = arith.addf %63, %70 : vector<24x256xf32>
    %72 = vector.extract_strided_slice %71 {offsets = [0, 0], sizes = [16, 256], strides = [1, 1]} : vector<24x256xf32> to vector<16x256xf32>
    %73 = vector.extract_strided_slice %71 {offsets = [16, 0], sizes = [1, 256], strides = [1, 1]} : vector<24x256xf32> to vector<1x256xf32>
    %cst_25 = arith.constant dense<0xFF800000> : vector<1xf32>
    %74 = vector.multi_reduction <maximumf>, %73, %cst_25 [1] : vector<1x256xf32> to vector<1xf32>
    %75 = vector.shape_cast %74 : vector<1xf32> to vector<1x1xf32>
    %76 = vector.broadcast %75 : vector<1x1xf32> to vector<1x256xf32>
    %77 = arith.subf %73, %76 : vector<1x256xf32>
    %78 = math.exp %77 : vector<1x256xf32>
    %cst_26 = arith.constant dense<0.000000e+00> : vector<1xf32>
    %79 = vector.multi_reduction <add>, %78, %cst_26 [1] : vector<1x256xf32> to vector<1xf32>
    %80 = vector.shape_cast %79 : vector<1xf32> to vector<1x1xf32>
    %81 = tpu.reciprocal %80 {approx = true} : vector<1x1xf32> -> vector<1x1xf32>
    %82 = vector.broadcast %81 : vector<1x1xf32> to vector<1x256xf32>
    %83 = arith.mulf %78, %82 : vector<1x256xf32>
    %84 = vector.shape_cast %83 : vector<1x256xf32> to vector<1x256xf32>
    %85 = vector.broadcast %84 : vector<1x256xf32> to vector<8x256xf32>
    %cst_27 = arith.constant dense<0.000000e+00> : vector<8x16xf32>
    %86 = tpu.matmul %85, %72, %cst_27 {dimension_numbers = #tpu.dot_dimension_numbers<[1], [1], [0], [0], [0, 0, 1, 0], [], []>} : vector<8x256xf32>, vector<16x256xf32>, vector<8x16xf32> -> vector<8x16xf32>
    %c9 = arith.constant 9 : index
    %c0_28 = arith.constant 0 : index
    %87 = vector.load %arg2[%c9, %c0_28] : memref<10x256xf32, #tpu.memory_space<vmem>>, vector<1x16xf32>
    %88 = vector.broadcast %87 : vector<1x16xf32> to vector<8x16xf32>
    %89 = arith.addf %86, %88 : vector<8x16xf32>
    %c0_29 = arith.constant 0 : index
    %c0_30 = arith.constant 0 : index
    %90 = vector.load %arg3[%c0_29, %c0_30] : memref<8x16xf32, #tpu.memory_space<vmem>>, vector<8x16xf32>
    tpu.vector_store %arg3[%c0_29, %c0_30], %89 {strides = array<i32>} : memref<8x16xf32, #tpu.memory_space<vmem>>, vector<8x16xf32>,
    return
  }
}

</mosaic_0001>

<llo_original>
// kernel: tpu_custom_call.1
$region0: #{tpu_custom_call.1}
  #allocation0 [shape = 'u32[]', space=smem, size = 0x4, offset = 0x4, fixed_abs, tag = 'smem constant byte address 0x4 - core index']
  #allocation1 [shape = 'u32[72,128]{1,0:T(1,128)}', space=vmem, size = 0x9000, scoped, tag = 'internal scratch']
  #allocation2 [shape = 'f32[224,256]{1,0:T(8,128)}', space=vmem, size = 0x38000, scoped, tag = 'scratch operand']
  %s0 = inlined_call_operand.hbm [shape: f32[256,256], index: 0, kind: input, shape index: {}]
  %s1 = inlined_call_operand.hbm [shape: bf16[224,256], index: 1, kind: input, shape index: {}]
  %s2 = inlined_call_operand.hbm [shape: f32[10,256], index: 2, kind: input, shape index: {}]
  %s3 = inlined_call_operand.hbm [shape: f32[8,16], index: 3, kind: output, shape index: {}]
  %s4 = sld [smem:[#allocation0]]
  $region34: #{tpu_custom_call.1} parent=0
    _
  %s6 = ssub.s32 1, %s4
  %s7 = scalar_select 0, %s6, %s4
  $region1: #{tpu_custom_call.1} parent=0
    #allocation3 [shape = 'u8[262144]{0}', space=vmem, size = 0x40000, scoped, tag = 'input window, operand 0, single buffered']
    #allocation4 [shape = 's32[1]{0}', space=sflag, size = 0x4, scoped, tag = 'scoped memory for tpu_custom_call.1']
    #allocation5 [shape = 's32[1]{0}', space=sflag, size = 0x4, scoped, tag = 'scoped memory for tpu_custom_call.1']
    #allocation6 [shape = 'u8[114688]{0}', space=vmem, size = 0x1c000, scoped, tag = 'input window, operand 1, single buffered']
    #allocation7 [shape = 's32[1]{0}', space=sflag, size = 0x4, scoped, tag = 'scoped memory for tpu_custom_call.1']
    #allocation8 [shape = 'u8[16384]{0}', space=vmem, size = 0x4000, scoped, tag = 'input window, operand 2, single buffered']
    #allocation9 [shape = 'u8[4096]{0}', space=vmem, size = 0x1000, scoped, tag = 'output window, operand 0, single buffered']
    %8 = vsyncpa [#allocation4], 0
    %9 = vsyncpa [#allocation7], 0
    %10 = vsyncpa [#allocation5], 0
    // Predicated region
    $region2: #{tpu_custom_call.1} parent=1 // pred_check
      _
    $region3: #{tpu_custom_call.1} parent=1 // pred_check_branch
      %12 = sbr.rel (0) target = $region5
    $region4: #{tpu_custom_call.1} parent=1 // pred_region
      %14 = vsyncadd [#allocation4], 0
      %s15 = sshll.u32 %s0, 4
      %s16 = int_to_ptr.hbm [resolvable:$true] %s15
      %s17 = sshll.u32 [#allocation3], 4
      %s18 = int_to_ptr.vmem [resolvable:$true] %s17
      %23 = dma.hbm_to_vmem [thread:$0]  %s16, 8192, %s18, [#allocation4], 256, 256, 16
    $region5: #{tpu_custom_call.1} parent=1 // pred_fallthru
      _
    // Predicated region
    $region6: #{tpu_custom_call.1} parent=1 // pred_check
      _
    $region7: #{tpu_custom_call.1} parent=1 // pred_check_branch
      %25 = sbr.rel (0) target = $region9
    $region8: #{tpu_custom_call.1} parent=1 // pred_region
      %27 = vsyncadd [#allocation7], 0
      %s28 = sshll.u32 %s1, 4
      %s29 = int_to_ptr.hbm [resolvable:$true] %s28
      %s30 = sshll.u32 [#allocation6], 4
      %s31 = int_to_ptr.vmem [resolvable:$true] %s30
      %36 = dma.hbm_to_vmem [thread:$0]  %s29, 3584, %s31, [#allocation7], 128, 128, 8
    $region9: #{tpu_custom_call.1} parent=1 // pred_fallthru
      _
    // Predicated region
    $region10: #{tpu_custom_call.1} parent=1 // pred_check
      _
    $region11: #{tpu_custom_call.1} parent=1 // pred_check_branch
      %38 = sbr.rel (0) target = $region13
    $region12: #{tpu_custom_call.1} parent=1 // pred_region
      %40 = vsyncadd [#allocation7], 0
      %s41 = sshll.u32 %s2, 4
      %s42 = int_to_ptr.hbm [resolvable:$true] %s41
      %s43 = sshll.u32 [#allocation8], 4
      %s44 = int_to_ptr.vmem [resolvable:$true] %s43
      %49 = dma.hbm_to_vmem [thread:$0]  %s42, 512, %s44, [#allocation7], 256, 256, 16
    $region13: #{tpu_custom_call.1} parent=1 // pred_fallthru
      _
    // Predicated region
    $region14: #{tpu_custom_call.1} parent=1 // pred_check
      _
    $region15: #{tpu_custom_call.1} parent=1 // pred_check_branch
      %51 = sbr.rel (0) target = $region17
    $region16: #{tpu_custom_call.1} parent=1 // pred_region
      %53 = dma.done [#allocation4], 8192
    $region17: #{tpu_custom_call.1} parent=1 // pred_fallthru
      _
    // Predicated region
    $region18: #{tpu_custom_call.1} parent=1 // pred_check
      _
    $region19: #{tpu_custom_call.1} parent=1 // pred_check_branch
      %55 = sbr.rel (0) target = $region21
    $region20: #{tpu_custom_call.1} parent=1 // pred_region
      %57 = dma.done [#allocation7], 3584
    $region21: #{tpu_custom_call.1} parent=1 // pred_fallthru
      _
    // Predicated region
    $region22: #{tpu_custom_call.1} parent=1 // pred_check
      _
    $region23: #{tpu_custom_call.1} parent=1 // pred_check_branch
      %59 = sbr.rel (0) target = $region25
    $region24: #{tpu_custom_call.1} parent=1 // pred_region
      %61 = dma.done [#allocation7], 512
    $region25: #{tpu_custom_call.1} parent=1 // pred_fallthru
      _
    %v62 = vld [vmem:[#allocation3] sm:$0xff]
    %v63 = vld [vmem:[#allocation3 + $0x8] sm:$0xff]
    %v64 = vld [vmem:[#allocation3 + $0x10] sm:$0xff]
    %v65 = vld [vmem:[#allocation3 + $0x18] sm:$0xff]
    %v66 = vld [vmem:[#allocation3 + $0x20] sm:$0xff]
    %v67 = vld [vmem:[#allocation3 + $0x28] sm:$0xff]
    %v68 = vld [vmem:[#allocation3 + $0x30] sm:$0xff]
    %v69 = vld [vmem:[#allocation3 + $0x38] sm:$0xff]
    %v70 = vld [vmem:[#allocation3 + $0x40] sm:$0xff]
    %v71 = vld [vmem:[#allocation3 + $0x48] sm:$0xff]
    %v72 = vld [vmem:[#allocation3 + $0x50] sm:$0xff]
    %v73 = vld [vmem:[#allocation3 + $0x58] sm:$0xff]
    %v74 = vld [vmem:[#allocation3 + $0x60] sm:$0xff]
    %v75 = vld [vmem:[#allocation3 + $0x68] sm:$0xff]
    %v76 = vld [vmem:[#allocation3 + $0x70] sm:$0xff]
    %v77 = vld [vmem:[#allocation3 + $0x78] sm:$0xff]
    %v78 = vld [vmem:[#allocation3 + $0x80] sm:$0xff]
    %v79 = vld [vmem:[#allocation3 + $0x88] sm:$0xff]
    %v80 = vld [vmem:[#allocation3 + $0x90] sm:$0xff]
    %v81 = vld [vmem:[#allocation3 + $0x98] sm:$0xff]
    %v82 = vld [vmem:[#allocation3 + $0xa0] sm:$0xff]
    %v83 = vld [vmem:[#allocation3 + $0xa8] sm:$0xff]
    %v84 = vld [vmem:[#allocation3 + $0xb0] sm:$0xff]
    %v85 = vld [vmem:[#allocation3 + $0xb8] sm:$0xff]
    %v86 = vld [vmem:[#allocation3 + $0xc0] sm:$0xff]
    %v87 = vld [vmem:[#allocation3 + $0xc8] sm:$0xff]
    %v88 = vld [vmem:[#allocation3 + $0xd0] sm:$0xff]
    %v89 = vld [vmem:[#allocation3 + $0xd8] sm:$0xff]
    %v90 = vld [vmem:[#allocation3 + $0xe0] sm:$0xff]
    %v91 = vld [vmem:[#allocation3 + $0xe8] sm:$0xff]
    %v92 = vld [vmem:[#allocation3 + $0xf0] sm:$0xff]
    %v93 = vld [vmem:[#allocation3 + $0xf8] sm:$0xff]
    %v94 = vld [vmem:[#allocation3 + $0x100] sm:$0xff]
    %v95 = vld [vmem:[#allocation3 + $0x108] sm:$0xff]
    %v96 = vld [vmem:[#allocation3 + $0x110] sm:$0xff]
    %v97 = vld [vmem:[#allocation3 + $0x118] sm:$0xff]
    %v98 = vld [vmem:[#allocation3 + $0x120] sm:$0xff]
    %v99 = vld [vmem:[#allocation3 + $0x128] sm:$0xff]
    %v100 = vld [vmem:[#allocation3 + $0x130] sm:$0xff]
    %v101 = vld [vmem:[#allocation3 + $0x138] sm:$0xff]
    %v102 = vld [vmem:[#allocation3 + $0x140] sm:$0xff]
    %v103 = vld [vmem:[#allocation3 + $0x148] sm:$0xff]
    %v104 = vld [vmem:[#allocation3 + $0x150] sm:$0xff]
    %v105 = vld [vmem:[#allocation3 + $0x158] sm:$0xff]
    %v106 = vld [vmem:[#allocation3 + $0x160] sm:$0xff]
    %v107 = vld [vmem:[#allocation3 + $0x168] sm:$0xff]
    %v108 = vld [vmem:[#allocation3 + $0x170] sm:$0xff]
    %v109 = vld [vmem:[#allocation3 + $0x178] sm:$0xff]
    %v110 = vld [vmem:[#allocation3 + $0x180] sm:$0xff]
    %v111 = vld [vmem:[#allocation3 + $0x188] sm:$0xff]
    %v112 = vld [vmem:[#allocation3 + $0x190] sm:$0xff]
    %v113 = vld [vmem:[#allocation3 + $0x198] sm:$0xff]
    %v114 = vld [vmem:[#allocation3 + $0x1a0] sm:$0xff]
    %v115 = vld [vmem:[#allocation3 + $0x1a8] sm:$0xff]
    %v116 = vld [vmem:[#allocation3 + $0x1b0] sm:$0xff]
    %v117 = vld [vmem:[#allocation3 + $0x1b8] sm:$0xff]
    %v118 = vld [vmem:[#allocation3 + $0x1c0] sm:$0xff]
    %v119 = vld [vmem:[#allocation3 + $0x1c8] sm:$0xff]
    %v120 = vld [vmem:[#allocation3 + $0x1d0] sm:$0xff]
    %v121 = vld [vmem:[#allocation3 + $0x1d8] sm:$0xff]
    %v122 = vld [vmem:[#allocation3 + $0x1e0] sm:$0xff]
    %v123 = vld [vmem:[#allocation3 + $0x1e8] sm:$0xff]
    %v124 = vld [vmem:[#allocation3 + $0x1f0] sm:$0xff]
    %v125 = vld [vmem:[#allocation3 + $0x1f8] sm:$0xff]
    %v126 = vpack.c.bf16 %v64, %v62
    %v127 = vpack.c.bf16 %v65, %v63
    %v128 = vpack.c.bf16 %v68, %v66
    %v129 = vpack.c.bf16 %v69, %v67
    %v130 = vpack.c.bf16 %v72, %v70
    %v131 = vpack.c.bf16 %v73, %v71
    %v132 = vpack.c.bf16 %v76, %v74
    %v133 = vpack.c.bf16 %v77, %v75
    %v134 = vpack.c.bf16 %v80, %v78
    %v135 = vpack.c.bf16 %v81, %v79
    %v136 = vpack.c.bf16 %v84, %v82
    %v137 = vpack.c.bf16 %v85, %v83
    %v138 = vpack.c.bf16 %v88, %v86
    %v139 = vpack.c.bf16 %v89, %v87
    %v140 = vpack.c.bf16 %v92, %v90
    %v141 = vpack.c.bf16 %v93, %v91
    %v142 = vpack.c.bf16 %v96, %v94
    %v143 = vpack.c.bf16 %v97, %v95
    %v144 = vpack.c.bf16 %v100, %v98
    %v145 = vpack.c.bf16 %v101, %v99
    %v146 = vpack.c.bf16 %v104, %v102
    %v147 = vpack.c.bf16 %v105, %v103
    %v148 = vpack.c.bf16 %v108, %v106
    %v149 = vpack.c.bf16 %v109, %v107
    %v150 = vpack.c.bf16 %v112, %v110
    %v151 = vpack.c.bf16 %v113, %v111
    %v152 = vpack.c.bf16 %v116, %v114
    %v153 = vpack.c.bf16 %v117, %v115
    %v154 = vpack.c.bf16 %v120, %v118
    %v155 = vpack.c.bf16 %v121, %v119
    %v156 = vpack.c.bf16 %v124, %v122
    %v157 = vpack.c.bf16 %v125, %v123
    %v158 = vld [vmem:[#allocation6] sm:$0xff]
    %v159 = vld [vmem:[#allocation6 + $0x8] sm:$0xff]
    %v160 = vld [vmem:[#allocation6 + $0x10] sm:$0xff]
    %v161 = vld [vmem:[#allocation6 + $0x18] sm:$0xff]
    %v162 = vld [vmem:[#allocation6 + $0x20] sm:$0xff]
    %v163 = vld [vmem:[#allocation6 + $0x28] sm:$0xff]
    %v164 = vld [vmem:[#allocation6 + $0x30] sm:$0xff]
    %v165 = vld [vmem:[#allocation6 + $0x38] sm:$0xff]
    %v166 = vld [vmem:[#allocation6 + $0x40] sm:$0xff]
    %v167 = vld [vmem:[#allocation6 + $0x48] sm:$0xff]
    %v168 = vld [vmem:[#allocation6 + $0x50] sm:$0xff]
    %v169 = vld [vmem:[#allocation6 + $0x58] sm:$0xff]
    %v170 = vld [vmem:[#allocation6 + $0x60] sm:$0xff]
    %v171 = vld [vmem:[#allocation6 + $0x68] sm:$0xff]
    %v172 = vld [vmem:[#allocation6 + $0x70] sm:$0xff]
    %v173 = vld [vmem:[#allocation6 + $0x78] sm:$0xff]
    %v174 = vld [vmem:[#allocation6 + $0x80] sm:$0xff]
    %v175 = vld [vmem:[#allocation6 + $0x88] sm:$0xff]
    %v176 = vld [vmem:[#allocation6 + $0x90] sm:$0xff]
    %v177 = vld [vmem:[#allocation6 + $0x98] sm:$0xff]
    %v178 = vld [vmem:[#allocation6 + $0xa0] sm:$0xff]
    %v179 = vld [vmem:[#allocation6 + $0xa8] sm:$0xff]
    %v180 = vld [vmem:[#allocation6 + $0xb0] sm:$0xff]
    %v181 = vld [vmem:[#allocation6 + $0xb8] sm:$0xff]
    %v182 = vld [vmem:[#allocation6 + $0xc0] sm:$0xff]
    %v183 = vld [vmem:[#allocation6 + $0xc8] sm:$0xff]
    %v184 = vld [vmem:[#allocation6 + $0xd0] sm:$0xff]
    %v185 = vld [vmem:[#allocation6 + $0xd8] sm:$0xff]
    %v214 = vunpack.c.l.b16 %v158
    %v215 = vunpack.c.h.b16 %v158
    %v216 = vunpack.c.l.b16 %v159
    %v217 = vunpack.c.h.b16 %v159
    %v218 = vunpack.c.l.b16 %v160
    %v219 = vunpack.c.h.b16 %v160
    %v220 = vunpack.c.l.b16 %v161
    %v221 = vunpack.c.h.b16 %v161
    %v222 = vunpack.c.l.b16 %v162
    %v223 = vunpack.c.h.b16 %v162
    %v224 = vunpack.c.l.b16 %v163
    %v225 = vunpack.c.h.b16 %v163
    %v226 = vunpack.c.l.b16 %v164
    %v227 = vunpack.c.h.b16 %v164
    %v228 = vunpack.c.l.b16 %v165
    %v229 = vunpack.c.h.b16 %v165
    %v230 = vunpack.c.l.b16 %v166
    %v231 = vunpack.c.h.b16 %v166
    %v232 = vunpack.c.l.b16 %v167
    %v233 = vunpack.c.h.b16 %v167
    %v234 = vunpack.c.l.b16 %v168
    %v235 = vunpack.c.h.b16 %v168
    %v236 = vunpack.c.l.b16 %v169
    %v237 = vunpack.c.h.b16 %v169
    %v238 = vunpack.c.l.b16 %v170
    %v239 = vunpack.c.h.b16 %v170
    %v240 = vunpack.c.l.b16 %v171
    %v241 = vunpack.c.h.b16 %v171
    %v242 = vunpack.c.l.b16 %v172
    %v243 = vunpack.c.h.b16 %v172
    %v244 = vunpack.c.l.b16 %v173
    %v245 = vunpack.c.h.b16 %v173
    %v246 = vunpack.c.l.b16 %v174
    %v247 = vunpack.c.h.b16 %v174
    %v248 = vunpack.c.l.b16 %v175
    %v249 = vunpack.c.h.b16 %v175
    %v250 = vunpack.c.l.b16 %v176
    %v251 = vunpack.c.h.b16 %v176
    %v252 = vunpack.c.l.b16 %v177
    %v253 = vunpack.c.h.b16 %v177
    %v254 = vunpack.c.l.b16 %v178
    %v255 = vunpack.c.h.b16 %v178
    %v256 = vunpack.c.l.b16 %v179
    %v257 = vunpack.c.h.b16 %v179
    %v258 = vunpack.c.l.b16 %v180
    %v259 = vunpack.c.h.b16 %v180
    %v260 = vunpack.c.l.b16 %v181
    %v261 = vunpack.c.h.b16 %v181
    %v262 = vunpack.c.l.b16 %v182
    %v263 = vunpack.c.h.b16 %v182
    %v264 = vunpack.c.l.b16 %v183
    %v265 = vunpack.c.h.b16 %v183
    %v266 = vunpack.c.l.b16 %v184
    %v267 = vunpack.c.h.b16 %v184
    %v268 = vunpack.c.l.b16 %v185
    %v269 = vunpack.c.h.b16 %v185
    %v270 = vpack.c.b16 %v216, %v214
    %v271 = vpack.c.b16 %v217, %v215
    %v272 = vpack.c.b16 %v220, %v218
    %v273 = vpack.c.b16 %v221, %v219
    %v274 = vpack.c.b16 %v224, %v222
    %v275 = vpack.c.b16 %v225, %v223
    %v276 = vpack.c.b16 %v228, %v226
    %v277 = vpack.c.b16 %v229, %v227
    %v278 = vpack.c.b16 %v232, %v230
    %v279 = vpack.c.b16 %v233, %v231
    %v280 = vpack.c.b16 %v236, %v234
    %v281 = vpack.c.b16 %v237, %v235
    %v282 = vpack.c.b16 %v240, %v238
    %v283 = vpack.c.b16 %v241, %v239
    %v284 = vpack.c.b16 %v244, %v242
    %v285 = vpack.c.b16 %v245, %v243
    %v286 = vpack.c.b16 %v248, %v246
    %v287 = vpack.c.b16 %v249, %v247
    %v288 = vpack.c.b16 %v252, %v250
    %v289 = vpack.c.b16 %v253, %v251
    %v290 = vpack.c.b16 %v256, %v254
    %v291 = vpack.c.b16 %v257, %v255
    %v292 = vpack.c.b16 %v260, %v258
    %v293 = vpack.c.b16 %v261, %v259
    %v294 = vpack.c.b16 %v264, %v262
    %v295 = vpack.c.b16 %v265, %v263
    %v296 = vpack.c.b16 %v268, %v266
    %v297 = vpack.c.b16 %v269, %v267
    %326 = vmatpush.bf16.msra.mxu0 %v140
    %327 = vmatpush.bf16.msra.mxu0 %v138
    %328 = vmatpush.bf16.msra.mxu0 %v136
    %329 = vmatpush.bf16.msra.mxu0 %v134
    %330 = vmatpush.bf16.msra.mxu0 %v132
    %331 = vmatpush.bf16.msra.mxu0 %v130
    %332 = vmatpush.bf16.msra.mxu0 %v128
    %333 = vmatpush.bf16.msra.mxu0 %v126
    %334 = vmatmul.bf16.gmra.mxu0 %v270
    %v335 = vpop.f32.mrf.mxu0
    %v336 = vadd.f32 0.0, %v335
    %v337 = vpop.f32.mrf.mxu0
    %v338 = vadd.f32 0.0, %v337
    %339 = vmatmul.bf16.gmra.mxu0 %v272
    %v340 = vpop.f32.mrf.mxu0
    %v341 = vadd.f32 0.0, %v340
    %v342 = vpop.f32.mrf.mxu0
    %v343 = vadd.f32 0.0, %v342
    %344 = vmatmul.bf16.gmra.mxu0 %v274
    %v345 = vpop.f32.mrf.mxu0
    %v346 = vadd.f32 0.0, %v345
    %v347 = vpop.f32.mrf.mxu0
    %v348 = vadd.f32 0.0, %v347
    %349 = vmatmul.bf16.gmra.mxu0 %v276
    %v350 = vpop.f32.mrf.mxu0
    %v351 = vadd.f32 0.0, %v350
    %v352 = vpop.f32.mrf.mxu0
    %v353 = vadd.f32 0.0, %v352
    %354 = vmatmul.bf16.gmra.mxu0 %v278
    %v355 = vpop.f32.mrf.mxu0
    %v356 = vadd.f32 0.0, %v355
    %v357 = vpop.f32.mrf.mxu0
    %v358 = vadd.f32 0.0, %v357
    %359 = vmatmul.bf16.gmra.mxu0 %v280
    %v360 = vpop.f32.mrf.mxu0
    %v361 = vadd.f32 0.0, %v360
    %v362 = vpop.f32.mrf.mxu0
    %v363 = vadd.f32 0.0, %v362
    %364 = vmatmul.bf16.gmra.mxu0 %v282
    %v365 = vpop.f32.mrf.mxu0
    %v366 = vadd.f32 0.0, %v365
    %v367 = vpop.f32.mrf.mxu0
    %v368 = vadd.f32 0.0, %v367
    %369 = vmatmul.bf16.gmra.mxu0 %v284
    %v370 = vpop.f32.mrf.mxu0
    %v371 = vadd.f32 0.0, %v370
    %v372 = vpop.f32.mrf.mxu0
    %v373 = vadd.f32 0.0, %v372
    %374 = vmatmul.bf16.gmra.mxu0 %v286
    %v375 = vpop.f32.mrf.mxu0
    %v376 = vadd.f32 0.0, %v375
    %v377 = vpop.f32.mrf.mxu0
    %v378 = vadd.f32 0.0, %v377
    %379 = vmatmul.bf16.gmra.mxu0 %v288
    %v380 = vpop.f32.mrf.mxu0
    %v381 = vadd.f32 0.0, %v380
    %v382 = vpop.f32.mrf.mxu0
    %v383 = vadd.f32 0.0, %v382
    %384 = vmatmul.bf16.gmra.mxu0 %v290
    %v385 = vpop.f32.mrf.mxu0
    %v386 = vadd.f32 0.0, %v385
    %v387 = vpop.f32.mrf.mxu0
    %v388 = vadd.f32 0.0, %v387
    %389 = vmatmul.bf16.gmra.mxu0 %v292
    %v390 = vpop.f32.mrf.mxu0
    %v391 = vadd.f32 0.0, %v390
    %v392 = vpop.f32.mrf.mxu0
    %v393 = vadd.f32 0.0, %v392
    %394 = vmatmul.bf16.gmra.mxu0 %v294
    %v395 = vpop.f32.mrf.mxu0
    %v396 = vadd.f32 0.0, %v395
    %v397 = vpop.f32.mrf.mxu0
    %v398 = vadd.f32 0.0, %v397
    %399 = vmatmul.bf16.gmra.mxu0 %v296
    %v400 = vpop.f32.mrf.mxu0
    %v401 = vadd.f32 0.0, %v400
    %v402 = vpop.f32.mrf.mxu0
    %v403 = vadd.f32 0.0, %v402
    %404 = vdwg.mxu0
    %405 = vmatpush.bf16.msra.mxu0 %v156
    %406 = vmatpush.bf16.msra.mxu0 %v154
    %407 = vmatpush.bf16.msra.mxu0 %v152
    %408 = vmatpush.bf16.msra.mxu0 %v150
    %409 = vmatpush.bf16.msra.mxu0 %v148
    %410 = vmatpush.bf16.msra.mxu0 %v146
    %411 = vmatpush.bf16.msra.mxu0 %v144
    %412 = vmatpush.bf16.msra.mxu0 %v142
    %413 = vmatmul.bf16.gmra.mxu0 %v271
    %v414 = vpop.f32.mrf.mxu0
    %v415 = vadd.f32 %v336, %v414
    %v416 = vpop.f32.mrf.mxu0
    %v417 = vadd.f32 %v338, %v416
    %418 = vmatmul.bf16.gmra.mxu0 %v273
    %v419 = vpop.f32.mrf.mxu0
    %v420 = vadd.f32 %v341, %v419
    %v421 = vpop.f32.mrf.mxu0
    %v422 = vadd.f32 %v343, %v421
    %423 = vmatmul.bf16.gmra.mxu0 %v275
    %v424 = vpop.f32.mrf.mxu0
    %v425 = vadd.f32 %v346, %v424
    %v426 = vpop.f32.mrf.mxu0
    %v427 = vadd.f32 %v348, %v426
    %428 = vmatmul.bf16.gmra.mxu0 %v277
    %v429 = vpop.f32.mrf.mxu0
    %v430 = vadd.f32 %v351, %v429
    %v431 = vpop.f32.mrf.mxu0
    %v432 = vadd.f32 %v353, %v431
    %433 = vmatmul.bf16.gmra.mxu0 %v279
    %v434 = vpop.f32.mrf.mxu0
    %v435 = vadd.f32 %v356, %v434
    %v436 = vpop.f32.mrf.mxu0
    %v437 = vadd.f32 %v358, %v436
    %438 = vmatmul.bf16.gmra.mxu0 %v281
    %v439 = vpop.f32.mrf.mxu0
    %v440 = vadd.f32 %v361, %v439
    %v441 = vpop.f32.mrf.mxu0
    %v442 = vadd.f32 %v363, %v441
    %443 = vmatmul.bf16.gmra.mxu0 %v283
    %v444 = vpop.f32.mrf.mxu0
    %v445 = vadd.f32 %v366, %v444
    %v446 = vpop.f32.mrf.mxu0
    %v447 = vadd.f32 %v368, %v446
    %448 = vmatmul.bf16.gmra.mxu0 %v285
    %v449 = vpop.f32.mrf.mxu0
    %v450 = vadd.f32 %v371, %v449
    %v451 = vpop.f32.mrf.mxu0
    %v452 = vadd.f32 %v373, %v451
    %453 = vmatmul.bf16.gmra.mxu0 %v287
    %v454 = vpop.f32.mrf.mxu0
    %v455 = vadd.f32 %v376, %v454
    %v456 = vpop.f32.mrf.mxu0
    %v457 = vadd.f32 %v378, %v456
    %458 = vmatmul.bf16.gmra.mxu0 %v289
    %v459 = vpop.f32.mrf.mxu0
    %v460 = vadd.f32 %v381, %v459
    %v461 = vpop.f32.mrf.mxu0
    %v462 = vadd.f32 %v383, %v461
    %463 = vmatmul.bf16.gmra.mxu0 %v291
    %v464 = vpop.f32.mrf.mxu0
    %v465 = vadd.f32 %v386, %v464
    %v466 = vpop.f32.mrf.mxu0
    %v467 = vadd.f32 %v388, %v466
    %468 = vmatmul.bf16.gmra.mxu0 %v293
    %v469 = vpop.f32.mrf.mxu0
    %v470 = vadd.f32 %v391, %v469
    %v471 = vpop.f32.mrf.mxu0
    %v472 = vadd.f32 %v393, %v471
    %473 = vmatmul.bf16.gmra.mxu0 %v295
    %v474 = vpop.f32.mrf.mxu0
    %v475 = vadd.f32 %v396, %v474
    %v476 = vpop.f32.mrf.mxu0
    %v477 = vadd.f32 %v398, %v476
    %478 = vmatmul.bf16.gmra.mxu0 %v297
    %v479 = vpop.f32.mrf.mxu0
    %v480 = vadd.f32 %v401, %v479
    %v481 = vpop.f32.mrf.mxu0
    %v482 = vadd.f32 %v403, %v481
    %483 = vdwg.mxu0
    %484 = vmatpush.bf16.msra.mxu0 %v141
    %485 = vmatpush.bf16.msra.mxu0 %v139
    %486 = vmatpush.bf16.msra.mxu0 %v137
    %487 = vmatpush.bf16.msra.mxu0 %v135
    %488 = vmatpush.bf16.msra.mxu0 %v133
    %489 = vmatpush.bf16.msra.mxu0 %v131
    %490 = vmatpush.bf16.msra.mxu0 %v129
    %491 = vmatpush.bf16.msra.mxu0 %v127
    %492 = vmatmul.bf16.gmra.mxu0 %v270
    %v493 = vpop.f32.mrf.mxu0
    %v494 = vadd.f32 0.0, %v493
    %v495 = vpop.f32.mrf.mxu0
    %v496 = vadd.f32 0.0, %v495
    %497 = vmatmul.bf16.gmra.mxu0 %v272
    %v498 = vpop.f32.mrf.mxu0
    %v499 = vadd.f32 0.0, %v498
    %v500 = vpop.f32.mrf.mxu0
    %v501 = vadd.f32 0.0, %v500
    %502 = vmatmul.bf16.gmra.mxu0 %v274
    %v503 = vpop.f32.mrf.mxu0
    %v504 = vadd.f32 0.0, %v503
    %v505 = vpop.f32.mrf.mxu0
    %v506 = vadd.f32 0.0, %v505
    %507 = vmatmul.bf16.gmra.mxu0 %v276
    %v508 = vpop.f32.mrf.mxu0
    %v509 = vadd.f32 0.0, %v508
    %v510 = vpop.f32.mrf.mxu0
    %v511 = vadd.f32 0.0, %v510
    %512 = vmatmul.bf16.gmra.mxu0 %v278
    %v513 = vpop.f32.mrf.mxu0
    %v514 = vadd.f32 0.0, %v513
    %v515 = vpop.f32.mrf.mxu0
    %v516 = vadd.f32 0.0, %v515
    %517 = vmatmul.bf16.gmra.mxu0 %v280
    %v518 = vpop.f32.mrf.mxu0
    %v519 = vadd.f32 0.0, %v518
    %v520 = vpop.f32.mrf.mxu0
    %v521 = vadd.f32 0.0, %v520
    %522 = vmatmul.bf16.gmra.mxu0 %v282
    %v523 = vpop.f32.mrf.mxu0
    %v524 = vadd.f32 0.0, %v523
    %v525 = vpop.f32.mrf.mxu0
    %v526 = vadd.f32 0.0, %v525
    %527 = vmatmul.bf16.gmra.mxu0 %v284
    %v528 = vpop.f32.mrf.mxu0
    %v529 = vadd.f32 0.0, %v528
    %v530 = vpop.f32.mrf.mxu0
    %v531 = vadd.f32 0.0, %v530
    %532 = vmatmul.bf16.gmra.mxu0 %v286
    %v533 = vpop.f32.mrf.mxu0
    %v534 = vadd.f32 0.0, %v533
    %v535 = vpop.f32.mrf.mxu0
    %v536 = vadd.f32 0.0, %v535
    %537 = vmatmul.bf16.gmra.mxu0 %v288
    %v538 = vpop.f32.mrf.mxu0
    %v539 = vadd.f32 0.0, %v538
    %v540 = vpop.f32.mrf.mxu0
    %v541 = vadd.f32 0.0, %v540
    %542 = vmatmul.bf16.gmra.mxu0 %v290
    %v543 = vpop.f32.mrf.mxu0
    %v544 = vadd.f32 0.0, %v543
    %v545 = vpop.f32.mrf.mxu0
    %v546 = vadd.f32 0.0, %v545
    %547 = vmatmul.bf16.gmra.mxu0 %v292
    %v548 = vpop.f32.mrf.mxu0
    %v549 = vadd.f32 0.0, %v548
    %v550 = vpop.f32.mrf.mxu0
    %v551 = vadd.f32 0.0, %v550
    %552 = vmatmul.bf16.gmra.mxu0 %v294
    %v553 = vpop.f32.mrf.mxu0
    %v554 = vadd.f32 0.0, %v553
    %v555 = vpop.f32.mrf.mxu0
    %v556 = vadd.f32 0.0, %v555
    %557 = vmatmul.bf16.gmra.mxu0 %v296
    %v558 = vpop.f32.mrf.mxu0
    %v559 = vadd.f32 0.0, %v558
    %v560 = vpop.f32.mrf.mxu0
    %v561 = vadd.f32 0.0, %v560
    %562 = vdwg.mxu0
    %563 = vmatpush.bf16.msra.mxu0 %v157
    %564 = vmatpush.bf16.msra.mxu0 %v155
    %565 = vmatpush.bf16.msra.mxu0 %v153
    %566 = vmatpush.bf16.msra.mxu0 %v151
    %567 = vmatpush.bf16.msra.mxu0 %v149
    %568 = vmatpush.bf16.msra.mxu0 %v147
    %569 = vmatpush.bf16.msra.mxu0 %v145
    %570 = vmatpush.bf16.msra.mxu0 %v143
    %571 = vmatmul.bf16.gmra.mxu0 %v271
    %v572 = vpop.f32.mrf.mxu0
    %v573 = vadd.f32 %v494, %v572
    %v574 = vpop.f32.mrf.mxu0
    %v575 = vadd.f32 %v496, %v574
    %576 = vmatmul.bf16.gmra.mxu0 %v273
    %v577 = vpop.f32.mrf.mxu0
    %v578 = vadd.f32 %v499, %v577
    %v579 = vpop.f32.mrf.mxu0
    %v580 = vadd.f32 %v501, %v579
    %581 = vmatmul.bf16.gmra.mxu0 %v275
    %v582 = vpop.f32.mrf.mxu0
    %v583 = vadd.f32 %v504, %v582
    %v584 = vpop.f32.mrf.mxu0
    %v585 = vadd.f32 %v506, %v584
    %586 = vmatmul.bf16.gmra.mxu0 %v277
    %v587 = vpop.f32.mrf.mxu0
    %v588 = vadd.f32 %v509, %v587
    %v589 = vpop.f32.mrf.mxu0
    %v590 = vadd.f32 %v511, %v589
    %591 = vmatmul.bf16.gmra.mxu0 %v279
    %v592 = vpop.f32.mrf.mxu0
    %v593 = vadd.f32 %v514, %v592
    %v594 = vpop.f32.mrf.mxu0
    %v595 = vadd.f32 %v516, %v594
    %596 = vmatmul.bf16.gmra.mxu0 %v281
    %v597 = vpop.f32.mrf.mxu0
    %v598 = vadd.f32 %v519, %v597
    %v599 = vpop.f32.mrf.mxu0
    %v600 = vadd.f32 %v521, %v599
    %601 = vmatmul.bf16.gmra.mxu0 %v283
    %v602 = vpop.f32.mrf.mxu0
    %v603 = vadd.f32 %v524, %v602
    %v604 = vpop.f32.mrf.mxu0
    %v605 = vadd.f32 %v526, %v604
    %606 = vmatmul.bf16.gmra.mxu0 %v285
    %v607 = vpop.f32.mrf.mxu0
    %v608 = vadd.f32 %v529, %v607
    %v609 = vpop.f32.mrf.mxu0
    %v610 = vadd.f32 %v531, %v609
    %611 = vmatmul.bf16.gmra.mxu0 %v287
    %v612 = vpop.f32.mrf.mxu0
    %v613 = vadd.f32 %v534, %v612
    %v614 = vpop.f32.mrf.mxu0
    %v615 = vadd.f32 %v536, %v614
    %616 = vmatmul.bf16.gmra.mxu0 %v289
    %v617 = vpop.f32.mrf.mxu0
    %v618 = vadd.f32 %v539, %v617
    %v619 = vpop.f32.mrf.mxu0
    %v620 = vadd.f32 %v541, %v619
    %621 = vmatmul.bf16.gmra.mxu0 %v291
    %v622 = vpop.f32.mrf.mxu0
    %v623 = vadd.f32 %v544, %v622
    %v624 = vpop.f32.mrf.mxu0
    %v625 = vadd.f32 %v546, %v624
    %626 = vmatmul.bf16.gmra.mxu0 %v293
    %v627 = vpop.f32.mrf.mxu0
    %v628 = vadd.f32 %v549, %v627
    %v629 = vpop.f32.mrf.mxu0
    %v630 = vadd.f32 %v551, %v629
    %631 = vmatmul.bf16.gmra.mxu0 %v295
    %v632 = vpop.f32.mrf.mxu0
    %v633 = vadd.f32 %v554, %v632
    %v634 = vpop.f32.mrf.mxu0
    %v635 = vadd.f32 %v556, %v634
    %636 = vmatmul.bf16.gmra.mxu0 %v297
    %v637 = vpop.f32.mrf.mxu0
    %v638 = vadd.f32 %v559, %v637
    %v639 = vpop.f32.mrf.mxu0
    %v640 = vadd.f32 %v561, %v639
    %641 = vdwg.mxu0
    %642 = vst [vmem:[#allocation2] sm:$0xff] %v415
    %643 = vst [vmem:[#allocation2 + $0x8] sm:$0xff] %v573
    %644 = vst [vmem:[#allocation2 + $0x10] sm:$0xff] %v417
    %645 = vst [vmem:[#allocation2 + $0x18] sm:$0xff] %v575
    %646 = vst [vmem:[#allocation2 + $0x20] sm:$0xff] %v420
    %647 = vst [vmem:[#allocation2 + $0x28] sm:$0xff] %v578
    %648 = vst [vmem:[#allocation2 + $0x30] sm:$0xff] %v422
    %649 = vst [vmem:[#allocation2 + $0x38] sm:$0xff] %v580
    %650 = vst [vmem:[#allocation2 + $0x40] sm:$0xff] %v425
    %651 = vst [vmem:[#allocation2 + $0x48] sm:$0xff] %v583
    %652 = vst [vmem:[#allocation2 + $0x50] sm:$0xff] %v427
    %653 = vst [vmem:[#allocation2 + $0x58] sm:$0xff] %v585
    %654 = vst [vmem:[#allocation2 + $0x60] sm:$0xff] %v430
    %655 = vst [vmem:[#allocation2 + $0x68] sm:$0xff] %v588
    %656 = vst [vmem:[#allocation2 + $0x70] sm:$0xff] %v432
    %657 = vst [vmem:[#allocation2 + $0x78] sm:$0xff] %v590
    %658 = vst [vmem:[#allocation2 + $0x80] sm:$0xff] %v435
    %659 = vst [vmem:[#allocation2 + $0x88] sm:$0xff] %v593
    %660 = vst [vmem:[#allocation2 + $0x90] sm:$0xff] %v437
    %661 = vst [vmem:[#allocation2 + $0x98] sm:$0xff] %v595
    %662 = vst [vmem:[#allocation2 + $0xa0] sm:$0xff] %v440
    %663 = vst [vmem:[#allocation2 + $0xa8] sm:$0xff] %v598
    %664 = vst [vmem:[#allocation2 + $0xb0] sm:$0xff] %v442
    %665 = vst [vmem:[#allocation2 + $0xb8] sm:$0xff] %v600
    %666 = vst [vmem:[#allocation2 + $0xc0] sm:$0xff] %v445
    %667 = vst [vmem:[#allocation2 + $0xc8] sm:$0xff] %v603
    %668 = vst [vmem:[#allocation2 + $0xd0] sm:$0xff] %v447
    %669 = vst [vmem:[#allocation2 + $0xd8] sm:$0xff] %v605
    %670 = vst [vmem:[#allocation2 + $0xe0] sm:$0xff] %v450
    %671 = vst [vmem:[#allocation2 + $0xe8] sm:$0xff] %v608
    %672 = vst [vmem:[#allocation2 + $0xf0] sm:$0xff] %v452
    %673 = vst [vmem:[#allocation2 + $0xf8] sm:$0xff] %v610
    %674 = vst [vmem:[#allocation2 + $0x100] sm:$0xff] %v455
    %675 = vst [vmem:[#allocation2 + $0x108] sm:$0xff] %v613
    %676 = vst [vmem:[#allocation2 + $0x110] sm:$0xff] %v457
    %677 = vst [vmem:[#allocation2 + $0x118] sm:$0xff] %v615
    %678 = vst [vmem:[#allocation2 + $0x120] sm:$0xff] %v460
    %679 = vst [vmem:[#allocation2 + $0x128] sm:$0xff] %v618
    %680 = vst [vmem:[#allocation2 + $0x130] sm:$0xff] %v462
    %681 = vst [vmem:[#allocation2 + $0x138] sm:$0xff] %v620
    %682 = vst [vmem:[#allocation2 + $0x140] sm:$0xff] %v465
    %683 = vst [vmem:[#allocation2 + $0x148] sm:$0xff] %v623
    %684 = vst [vmem:[#allocation2 + $0x150] sm:$0xff] %v467
    %685 = vst [vmem:[#allocation2 + $0x158] sm:$0xff] %v625
    %686 = vst [vmem:[#allocation2 + $0x160] sm:$0xff] %v470
    %687 = vst [vmem:[#allocation2 + $0x168] sm:$0xff] %v628
    %688 = vst [vmem:[#allocation2 + $0x170] sm:$0xff] %v472
    %689 = vst [vmem:[#allocation2 + $0x178] sm:$0xff] %v630
    %690 = vst [vmem:[#allocation2 + $0x180] sm:$0xff] %v475
    %691 = vst [vmem:[#allocation2 + $0x188] sm:$0xff] %v633
    %692 = vst [vmem:[#allocation2 + $0x190] sm:$0xff] %v477
    %693 = vst [vmem:[#allocation2 + $0x198] sm:$0xff] %v635
    %694 = vst [vmem:[#allocation2 + $0x1a0] sm:$0xff] %v480
    %695 = vst [vmem:[#allocation2 + $0x1a8] sm:$0xff] %v638
    %696 = vst [vmem:[#allocation2 + $0x1b0] sm:$0xff] %v482
    %697 = vst [vmem:[#allocation2 + $0x1b8] sm:$0xff] %v640
    %v698 = vld [vmem:[#allocation2] sm:$0xff]
    %v699 = vld [vmem:[#allocation2 + $0x8] sm:$0xff]
    %v700 = vld [vmem:[#allocation2 + $0x10] sm:$0xff]
    %v701 = vld [vmem:[#allocation2 + $0x18] sm:$0xff]
    %v702 = vld [vmem:[#allocation2 + $0x20] sm:$0xff]
    %v703 = vld [vmem:[#allocation2 + $0x28] sm:$0xff]
    %707 = vrot.lane.b32.xlu0 %v699, 17
    %v708 = vpop.permute.xlu0 %707
    %709 = vrot.lane.b32.xlu0 %v701, 17
    %v710 = vpop.permute.xlu0 %709
    %711 = vrot.lane.b32.xlu0 %v703, 17
    %v712 = vpop.permute.xlu0 %711
    %719 = vrot.lane.b32.xlu0 %v698, 17
    %v720 = vpop.permute.xlu0 %719
    %721 = vrot.lane.b32.xlu0 %v700, 17
    %v722 = vpop.permute.xlu0 %721
    %723 = vrot.lane.b32.xlu0 %v702, 17
    %v724 = vpop.permute.xlu0 %723
    %vm725 = vcmask 138240
    %v726 = vsel %vm725, %v720, %v708
    %v727 = vsel %vm725, %v722, %v710
    %v728 = vsel %vm725, %v724, %v712
    %v735 = vsel %vm725, %v708, %v720
    %v736 = vsel %vm725, %v710, %v722
    %v737 = vsel %vm725, %v712, %v724
    %v738 = vld [vmem:[#allocation8] ss:$8 sm:$0x3]
    %v740 = vperm.slane %v738, 0
    %v741 = vperm.slane %v738, 1
    %v744 = vmul.f32 %v735, %v740
    %v745 = vmul.f32 %v726, %v741
    %v746 = vmul.f32 %v736, %v740
    %v747 = vmul.f32 %v727, %v741
    %v748 = vmul.f32 %v737, %v740
    %v749 = vmul.f32 %v728, %v741
    %v750 = vadd.f32 %v744, 0.0
    %v751 = vadd.f32 %v745, 0.0
    %v752 = vadd.f32 %v746, 0.0
    %v753 = vadd.f32 %v747, 0.0
    %v754 = vadd.f32 %v748, 0.0
    %v755 = vadd.f32 %v749, 0.0
    %v756 = vld [vmem:[#allocation2 + $0x30] sm:$0xff]
    %v757 = vld [vmem:[#allocation2 + $0x38] sm:$0xff]
    %v758 = vld [vmem:[#allocation2 + $0x40] sm:$0xff]
    %v759 = vld [vmem:[#allocation2 + $0x48] sm:$0xff]
    %v760 = vld [vmem:[#allocation2 + $0x50] sm:$0xff]
    %v761 = vld [vmem:[#allocation2 + $0x58] sm:$0xff]
    %765 = vrot.lane.b32.xlu0 %v757, 16
    %v766 = vpop.permute.xlu0 %765
    %767 = vrot.lane.b32.xlu0 %v759, 16
    %v768 = vpop.permute.xlu0 %767
    %769 = vrot.lane.b32.xlu0 %v761, 16
    %v770 = vpop.permute.xlu0 %769
    %777 = vrot.lane.b32.xlu0 %v756, 16
    %v778 = vpop.permute.xlu0 %777
    %779 = vrot.lane.b32.xlu0 %v758, 16
    %v780 = vpop.permute.xlu0 %779
    %781 = vrot.lane.b32.xlu0 %v760, 16
    %v782 = vpop.permute.xlu0 %781
    %vm783 = vcmask 130048
    %v784 = vsel %vm783, %v778, %v766
    %v785 = vsel %vm783, %v780, %v768
    %v786 = vsel %vm783, %v782, %v770
    %v793 = vsel %vm783, %v766, %v778
    %v794 = vsel %vm783, %v768, %v780
    %v795 = vsel %vm783, %v770, %v782
    %s796 = scalar_lea.vmem [#allocation8], 1
    %v797 = vld [vmem:[%s796] ss:$8 sm:$0x3]
    %v799 = vperm.slane %v797, 0
    %v800 = vperm.slane %v797, 1
    %v803 = vmul.f32 %v793, %v799
    %v804 = vmul.f32 %v784, %v800
    %v805 = vmul.f32 %v794, %v799
    %v806 = vmul.f32 %v785, %v800
    %v807 = vmul.f32 %v795, %v799
    %v808 = vmul.f32 %v786, %v800
    %v809 = vadd.f32 %v750, %v803
    %v810 = vadd.f32 %v751, %v804
    %v811 = vadd.f32 %v752, %v805
    %v812 = vadd.f32 %v753, %v806
    %v813 = vadd.f32 %v754, %v807
    %v814 = vadd.f32 %v755, %v808
    %v815 = vld [vmem:[#allocation2 + $0x60] sm:$0xff]
    %v816 = vld [vmem:[#allocation2 + $0x68] sm:$0xff]
    %v817 = vld [vmem:[#allocation2 + $0x70] sm:$0xff]
    %v818 = vld [vmem:[#allocation2 + $0x78] sm:$0xff]
    %v819 = vld [vmem:[#allocation2 + $0x80] sm:$0xff]
    %v820 = vld [vmem:[#allocation2 + $0x88] sm:$0xff]
    %824 = vrot.lane.b32.xlu0 %v816, 15
    %v825 = vpop.permute.xlu0 %824
    %826 = vrot.lane.b32.xlu0 %v818, 15
    %v827 = vpop.permute.xlu0 %826
    %828 = vrot.lane.b32.xlu0 %v820, 15
    %v829 = vpop.permute.xlu0 %828
    %836 = vrot.lane.b32.xlu0 %v815, 15
    %v837 = vpop.permute.xlu0 %836
    %838 = vrot.lane.b32.xlu0 %v817, 15
    %v839 = vpop.permute.xlu0 %838
    %840 = vrot.lane.b32.xlu0 %v819, 15
    %v841 = vpop.permute.xlu0 %840
    %vm842 = vcmask 121856
    %v843 = vsel %vm842, %v837, %v825
    %v844 = vsel %vm842, %v839, %v827
    %v845 = vsel %vm842, %v841, %v829
    %v852 = vsel %vm842, %v825, %v837
    %v853 = vsel %vm842, %v827, %v839
    %v854 = vsel %vm842, %v829, %v841
    %s855 = scalar_lea.vmem [#allocation8], 2
    %v856 = vld [vmem:[%s855] ss:$8 sm:$0x3]
    %v858 = vperm.slane %v856, 0
    %v859 = vperm.slane %v856, 1
    %v862 = vmul.f32 %v852, %v858
    %v863 = vmul.f32 %v843, %v859
    %v864 = vmul.f32 %v853, %v858
    %v865 = vmul.f32 %v844, %v859
    %v866 = vmul.f32 %v854, %v858
    %v867 = vmul.f32 %v845, %v859
    %v868 = vadd.f32 %v809, %v862
    %v869 = vadd.f32 %v810, %v863
    %v870 = vadd.f32 %v811, %v864
    %v871 = vadd.f32 %v812, %v865
    %v872 = vadd.f32 %v813, %v866
    %v873 = vadd.f32 %v814, %v867
    %v874 = vld [vmem:[#allocation2 + $0x90] sm:$0xff]
    %v875 = vld [vmem:[#allocation2 + $0x98] sm:$0xff]
    %v876 = vld [vmem:[#allocation2 + $0xa0] sm:$0xff]
    %v877 = vld [vmem:[#allocation2 + $0xa8] sm:$0xff]
    %v878 = vld [vmem:[#allocation2 + $0xb0] sm:$0xff]
    %v879 = vld [vmem:[#allocation2 + $0xb8] sm:$0xff]
    %883 = vrot.lane.b32.xlu0 %v875, 1
    %v884 = vpop.permute.xlu0 %883
    %885 = vrot.lane.b32.xlu0 %v877, 1
    %v886 = vpop.permute.xlu0 %885
    %887 = vrot.lane.b32.xlu0 %v879, 1
    %v888 = vpop.permute.xlu0 %887
    %895 = vrot.lane.b32.xlu0 %v874, 1
    %v896 = vpop.permute.xlu0 %895
    %897 = vrot.lane.b32.xlu0 %v876, 1
    %v898 = vpop.permute.xlu0 %897
    %899 = vrot.lane.b32.xlu0 %v878, 1
    %v900 = vpop.permute.xlu0 %899
    %vm901 = vcmask 7168
    %v902 = vsel %vm901, %v896, %v884
    %v903 = vsel %vm901, %v898, %v886
    %v904 = vsel %vm901, %v900, %v888
    %v911 = vsel %vm901, %v884, %v896
    %v912 = vsel %vm901, %v886, %v898
    %v913 = vsel %vm901, %v888, %v900
    %s914 = scalar_lea.vmem [#allocation8], 3
    %v915 = vld [vmem:[%s914] ss:$8 sm:$0x3]
    %v917 = vperm.slane %v915, 0
    %v918 = vperm.slane %v915, 1
    %v921 = vmul.f32 %v911, %v917
    %v922 = vmul.f32 %v902, %v918
    %v923 = vmul.f32 %v912, %v917
    %v924 = vmul.f32 %v903, %v918
    %v925 = vmul.f32 %v913, %v917
    %v926 = vmul.f32 %v904, %v918
    %v927 = vadd.f32 %v868, %v921
    %v928 = vadd.f32 %v869, %v922
    %v929 = vadd.f32 %v870, %v923
    %v930 = vadd.f32 %v871, %v924
    %v931 = vadd.f32 %v872, %v925
    %v932 = vadd.f32 %v873, %v926
    %v933 = vld [vmem:[#allocation2 + $0xc0] sm:$0xff]
    %v934 = vld [vmem:[#allocation2 + $0xc8] sm:$0xff]
    %v935 = vld [vmem:[#allocation2 + $0xd0] sm:$0xff]
    %v936 = vld [vmem:[#allocation2 + $0xd8] sm:$0xff]
    %v937 = vld [vmem:[#allocation2 + $0xe0] sm:$0xff]
    %v938 = vld [vmem:[#allocation2 + $0xe8] sm:$0xff]
    %v939 = vadd.f32 %v927, %v933
    %v940 = vadd.f32 %v928, %v934
    %v941 = vadd.f32 %v929, %v935
    %v942 = vadd.f32 %v930, %v936
    %v943 = vadd.f32 %v931, %v937
    %v944 = vadd.f32 %v932, %v938
    %v945 = vld [vmem:[#allocation2 + $0xf0] sm:$0xff]
    %v946 = vld [vmem:[#allocation2 + $0xf8] sm:$0xff]
    %v947 = vld [vmem:[#allocation2 + $0x100] sm:$0xff]
    %v948 = vld [vmem:[#allocation2 + $0x108] sm:$0xff]
    %v949 = vld [vmem:[#allocation2 + $0x110] sm:$0xff]
    %v950 = vld [vmem:[#allocation2 + $0x118] sm:$0xff]
    %957 = vrot.lane.b32.xlu0 %v945, 127
    %v958 = vpop.permute.xlu0 %957
    %959 = vrot.lane.b32.xlu0 %v946, 127
    %v960 = vpop.permute.xlu0 %959
    %961 = vrot.lane.b32.xlu0 %v947, 127
    %v962 = vpop.permute.xlu0 %961
    %963 = vrot.lane.b32.xlu0 %v948, 127
    %v964 = vpop.permute.xlu0 %963
    %965 = vrot.lane.b32.xlu0 %v949, 127
    %v966 = vpop.permute.xlu0 %965
    %967 = vrot.lane.b32.xlu0 %v950, 127
    %v968 = vpop.permute.xlu0 %967
    %vm969 = vcmask 1039360
    %v970 = vsel %vm969, %v958, %v960
    %v971 = vsel %vm969, %v962, %v964
    %v972 = vsel %vm969, %v966, %v968
    %v982 = vsel %vm969, %v960, %v958
    %v983 = vsel %vm969, %v964, %v962
    %v984 = vsel %vm969, %v968, %v966
    %s985 = scalar_lea.vmem [#allocation8], 5
    %v986 = vld [vmem:[%s985] ss:$8 sm:$0x3]
    %v988 = vperm.slane %v986, 0
    %v989 = vperm.slane %v986, 1
    %v992 = vmul.f32 %v970, %v988
    %v993 = vmul.f32 %v982, %v989
    %v994 = vmul.f32 %v971, %v988
    %v995 = vmul.f32 %v983, %v989
    %v996 = vmul.f32 %v972, %v988
    %v997 = vmul.f32 %v984, %v989
    %v998 = vadd.f32 %v939, %v992
    %v999 = vadd.f32 %v940, %v993
    %v1000 = vadd.f32 %v941, %v994
    %v1001 = vadd.f32 %v942, %v995
    %v1002 = vadd.f32 %v943, %v996
    %v1003 = vadd.f32 %v944, %v997
    %v1004 = vld [vmem:[#allocation2 + $0x120] sm:$0xff]
    %v1005 = vld [vmem:[#allocation2 + $0x128] sm:$0xff]
    %v1006 = vld [vmem:[#allocation2 + $0x130] sm:$0xff]
    %v1007 = vld [vmem:[#allocation2 + $0x138] sm:$0xff]
    %v1008 = vld [vmem:[#allocation2 + $0x140] sm:$0xff]
    %v1009 = vld [vmem:[#allocation2 + $0x148] sm:$0xff]
    %1016 = vrot.lane.b32.xlu0 %v1004, 113
    %v1017 = vpop.permute.xlu0 %1016
    %1018 = vrot.lane.b32.xlu0 %v1005, 113
    %v1019 = vpop.permute.xlu0 %1018
    %1020 = vrot.lane.b32.xlu0 %v1006, 113
    %v1021 = vpop.permute.xlu0 %1020
    %1022 = vrot.lane.b32.xlu0 %v1007, 113
    %v1023 = vpop.permute.xlu0 %1022
    %1024 = vrot.lane.b32.xlu0 %v1008, 113
    %v1025 = vpop.permute.xlu0 %1024
    %1026 = vrot.lane.b32.xlu0 %v1009, 113
    %v1027 = vpop.permute.xlu0 %1026
    %vm1028 = vcmask 924672
    %v1029 = vsel %vm1028, %v1017, %v1019
    %v1030 = vsel %vm1028, %v1021, %v1023
    %v1031 = vsel %vm1028, %v1025, %v1027
    %v1041 = vsel %vm1028, %v1019, %v1017
    %v1042 = vsel %vm1028, %v1023, %v1021
    %v1043 = vsel %vm1028, %v1027, %v1025
    %s1044 = scalar_lea.vmem [#allocation8], 6
    %v1045 = vld [vmem:[%s1044] ss:$8 sm:$0x3]
    %v1047 = vperm.slane %v1045, 0
    %v1048 = vperm.slane %v1045, 1
    %v1051 = vmul.f32 %v1029, %v1047
    %v1052 = vmul.f32 %v1041, %v1048
    %v1053 = vmul.f32 %v1030, %v1047
    %v1054 = vmul.f32 %v1042, %v1048
    %v1055 = vmul.f32 %v1031, %v1047
    %v1056 = vmul.f32 %v1043, %v1048
    %v1057 = vadd.f32 %v998, %v1051
    %v1058 = vadd.f32 %v999, %v1052
    %v1059 = vadd.f32 %v1000, %v1053
    %v1060 = vadd.f32 %v1001, %v1054
    %v1061 = vadd.f32 %v1002, %v1055
    %v1062 = vadd.f32 %v1003, %v1056
    %v1063 = vld [vmem:[#allocation2 + $0x150] sm:$0xff]
    %v1064 = vld [vmem:[#allocation2 + $0x158] sm:$0xff]
    %v1065 = vld [vmem:[#allocation2 + $0x160] sm:$0xff]
    %v1066 = vld [vmem:[#allocation2 + $0x168] sm:$0xff]
    %v1067 = vld [vmem:[#allocation2 + $0x170] sm:$0xff]
    %v1068 = vld [vmem:[#allocation2 + $0x178] sm:$0xff]
    %1075 = vrot.lane.b32.xlu0 %v1063, 112
    %v1076 = vpop.permute.xlu0 %1075
    %1077 = vrot.lane.b32.xlu0 %v1064, 112
    %v1078 = vpop.permute.xlu0 %1077
    %1079 = vrot.lane.b32.xlu0 %v1065, 112
    %v1080 = vpop.permute.xlu0 %1079
    %1081 = vrot.lane.b32.xlu0 %v1066, 112
    %v1082 = vpop.permute.xlu0 %1081
    %1083 = vrot.lane.b32.xlu0 %v1067, 112
    %v1084 = vpop.permute.xlu0 %1083
    %1085 = vrot.lane.b32.xlu0 %v1068, 112
    %v1086 = vpop.permute.xlu0 %1085
    %vm1087 = vcmask 916480
    %v1088 = vsel %vm1087, %v1076, %v1078
    %v1089 = vsel %vm1087, %v1080, %v1082
    %v1090 = vsel %vm1087, %v1084, %v1086
    %v1100 = vsel %vm1087, %v1078, %v1076
    %v1101 = vsel %vm1087, %v1082, %v1080
    %v1102 = vsel %vm1087, %v1086, %v1084
    %s1103 = scalar_lea.vmem [#allocation8], 7
    %v1104 = vld [vmem:[%s1103] ss:$8 sm:$0x3]
    %v1106 = vperm.slane %v1104, 0
    %v1107 = vperm.slane %v1104, 1
    %v1110 = vmul.f32 %v1088, %v1106
    %v1111 = vmul.f32 %v1100, %v1107
    %v1112 = vmul.f32 %v1089, %v1106
    %v1113 = vmul.f32 %v1101, %v1107
    %v1114 = vmul.f32 %v1090, %v1106
    %v1115 = vmul.f32 %v1102, %v1107
    %v1116 = vadd.f32 %v1057, %v1110
    %v1117 = vadd.f32 %v1058, %v1111
    %v1118 = vadd.f32 %v1059, %v1112
    %v1119 = vadd.f32 %v1060, %v1113
    %v1120 = vadd.f32 %v1061, %v1114
    %v1121 = vadd.f32 %v1062, %v1115
    %v1122 = vld [vmem:[#allocation2 + $0x180] sm:$0xff]
    %v1123 = vld [vmem:[#allocation2 + $0x188] sm:$0xff]
    %v1124 = vld [vmem:[#allocation2 + $0x190] sm:$0xff]
    %v1125 = vld [vmem:[#allocation2 + $0x198] sm:$0xff]
    %v1126 = vld [vmem:[#allocation2 + $0x1a0] sm:$0xff]
    %v1127 = vld [vmem:[#allocation2 + $0x1a8] sm:$0xff]
    %1134 = vrot.lane.b32.xlu0 %v1122, 111
    %v1135 = vpop.permute.xlu0 %1134
    %1136 = vrot.lane.b32.xlu0 %v1123, 111
    %v1137 = vpop.permute.xlu0 %1136
    %1138 = vrot.lane.b32.xlu0 %v1124, 111
    %v1139 = vpop.permute.xlu0 %1138
    %1140 = vrot.lane.b32.xlu0 %v1125, 111
    %v1141 = vpop.permute.xlu0 %1140
    %1142 = vrot.lane.b32.xlu0 %v1126, 111
    %v1143 = vpop.permute.xlu0 %1142
    %1144 = vrot.lane.b32.xlu0 %v1127, 111
    %v1145 = vpop.permute.xlu0 %1144
    %vm1146 = vcmask 908288
    %v1147 = vsel %vm1146, %v1135, %v1137
    %v1148 = vsel %vm1146, %v1139, %v1141
    %v1149 = vsel %vm1146, %v1143, %v1145
    %v1159 = vsel %vm1146, %v1137, %v1135
    %v1160 = vsel %vm1146, %v1141, %v1139
    %v1161 = vsel %vm1146, %v1145, %v1143
    %s1162 = scalar_lea.vmem [#allocation8], 16
    %v1163 = vld [vmem:[%s1162] ss:$8 sm:$0x3]
    %v1165 = vperm.slane %v1163, 0
    %v1166 = vperm.slane %v1163, 1
    %v1169 = vmul.f32 %v1147, %v1165
    %v1170 = vmul.f32 %v1159, %v1166
    %v1171 = vmul.f32 %v1148, %v1165
    %v1172 = vmul.f32 %v1160, %v1166
    %v1173 = vmul.f32 %v1149, %v1165
    %v1174 = vmul.f32 %v1161, %v1166
    %v1175 = vadd.f32 %v1116, %v1169
    %v1176 = vadd.f32 %v1117, %v1170
    %v1177 = vadd.f32 %v1118, %v1171
    %v1178 = vadd.f32 %v1119, %v1172
    %v1179 = vadd.f32 %v1120, %v1173
    %v1180 = vadd.f32 %v1121, %v1174
    %vm1181 = vcmask 1040384
    %v1182 = vsel %vm1181, %v1179, -inf
    %v1183 = vsel %vm1181, %v1180, -inf
    %v1184 = vmax.f32 %v1182, %v1183
    %1185 = vmax.xlane.f32.xlu0 %v1184
    %v1186 = vpop.xlane.xlu0 %1185
    %v1187 = vsub.f32 %v1179, %v1186
    %v1188 = vsub.f32 %v1180, %v1186
    %v1189 = vmul.f32 %v1187, 1.442695
    %v1190 = vpow.pop %v1189
    %v1191 = vmul.f32 %v1188, 1.442695
    %v1192 = vpow.pop %v1191
    %v1193 = vsel %vm1181, %v1190, 0.0
    %v1194 = vsel %vm1181, %v1192, 0.0
    %v1195 = vadd.f32 %v1193, %v1194
    %1196 = vadd.xlane.f32.xlu0 %v1195
    %v1197 = vpop.xlane.xlu0 %1196
    %v1198 = vrcp.pop %v1197
    %v1199 = vmul.f32 %v1190, %v1198
    %v1200 = vmul.f32 %v1192, %v1198
    %v1201 = vperm.slane %v1199, 0
    %v1202 = vperm.slane %v1200, 0
    %v1203 = vld [vmem:[#allocation8 + $0x11] ss:$0 sm:$0xff]
    %1204 = vmatpush.xpose.msra.mxu0 0.0
    %1205 = vmatpush.xpose.msra.mxu0 0.0
    %1206 = vmatpush.xpose.msra.mxu0 0.0
    %1207 = vmatpush.xpose.msra.mxu0 0.0
    %1208 = vmatpush.xpose.msra.mxu0 0.0
    %1209 = vmatpush.xpose.msra.mxu0 0.0
    %1210 = vmatpush.xpose.msra.mxu0 0.0
    %1211 = vmatpush.xpose.msra.mxu0 0.0
    %1212 = vmatpush.xpose.msra.mxu0 0.0
    %1213 = vmatpush.xpose.msra.mxu0 0.0
    %1214 = vmatpush.xpose.msra.mxu0 0.0
    %1215 = vmatpush.xpose.msra.mxu0 0.0
    %1216 = vmatpush.xpose.msra.mxu0 0.0
    %1217 = vmatpush.xpose.msra.mxu0 0.0
    %1218 = vmatpush.xpose.msra.mxu0 %v1177
    %1219 = vmatpush.xpose.msra.mxu0 %v1175
    %1220 = vmatmul.f32.gmra.mxu0 %v1201
    %v1221 = vpop.f32.mrf.mxu0
    %v1222 = vadd.f32 %v1203, %v1221
    %1223 = vdwg.mxu0
    %1224 = vmatpush.xpose.msra.mxu0 0.0
    %1225 = vmatpush.xpose.msra.mxu0 0.0
    %1226 = vmatpush.xpose.msra.mxu0 0.0
    %1227 = vmatpush.xpose.msra.mxu0 0.0
    %1228 = vmatpush.xpose.msra.mxu0 0.0
    %1229 = vmatpush.xpose.msra.mxu0 0.0
    %1230 = vmatpush.xpose.msra.mxu0 0.0
    %1231 = vmatpush.xpose.msra.mxu0 0.0
    %1232 = vmatpush.xpose.msra.mxu0 0.0
    %1233 = vmatpush.xpose.msra.mxu0 0.0
    %1234 = vmatpush.xpose.msra.mxu0 0.0
    %1235 = vmatpush.xpose.msra.mxu0 0.0
    %1236 = vmatpush.xpose.msra.mxu0 0.0
    %1237 = vmatpush.xpose.msra.mxu0 0.0
    %1238 = vmatpush.xpose.msra.mxu0 %v1178
    %1239 = vmatpush.xpose.msra.mxu0 %v1176
    %1240 = vmatmul.f32.gmra.mxu0 %v1202
    %v1241 = vpop.f32.mrf.mxu0
    %v1242 = vadd.f32 %v1222, %v1241
    %1243 = vdwg.mxu0
    %1244 = vst.msk [vmem:[#allocation9] sm:$0xff] %vm783, %v1242
    // Predicated region
    $region26: #{tpu_custom_call.1} parent=1 // pred_check
      _
    $region27: #{tpu_custom_call.1} parent=1 // pred_check_branch
      %1246 = sbr.rel (0) target = $region29
    $region28: #{tpu_custom_call.1} parent=1 // pred_region
      %1248 = vsyncadd [#allocation5], 0
      %s1250 = sshll.u32 [#allocation9], 4
      %s1251 = int_to_ptr.vmem [resolvable:$true] %s1250
      %s1252 = sshll.u32 %s3, 4
      %s1253 = int_to_ptr.hbm [resolvable:$true] %s1252
      %1255 = dma.vmem_to_hbm [thread:$0]  %s1251, 128, %s1253, [#allocation5]
    $region29: #{tpu_custom_call.1} parent=1 // pred_fallthru
      _
    // Predicated region
    $region30: #{tpu_custom_call.1} parent=1 // pred_check
      _
    $region31: #{tpu_custom_call.1} parent=1 // pred_check_branch
      %1257 = sbr.rel (0) target = $region33
    $region32: #{tpu_custom_call.1} parent=1 // pred_region
      %1259 = dma.done [#allocation5], 128
    $region33: #{tpu_custom_call.1} parent=1 // pred_fallthru
      _
    %1260 = vsyncpa [#allocation4], 1
    %1261 = vsyncpa [#allocation7], 1
    %1262 = vsyncpa [#allocation5], 1

</llo_original>
